<compile_context>
chip_gen: v7x
topology: tpu7x:2x2x1
jax: 0.10.0
libtpu: 0.0.40
codegen_flags: <defaults>
</compile_context>

<pallas_src>
import functools

import jax
import jax.numpy as jnp
from jax import lax
from jax.experimental import pallas as pl
from jax.experimental.pallas import tpu as pltpu


# --------------------------- Fused attention kernel --------------------------
def _fused_attention_kernel(x_ref, wqkv_ref, wo_ref, bo_ref, rope_ref, o_ref,
                            *, num_heads, dim_head):
    H, D = num_heads, dim_head
    inner = H * D
    N = x_ref.shape[1]

    x = x_ref[0]                                           # (N, dim) f32

    # ---- fused QKV projection: bf16 operands on the MXU, f32 accumulation ----
    qkv = jnp.dot(x.astype(jnp.bfloat16),
                  wqkv_ref[...].astype(jnp.bfloat16),
                  preferred_element_type=jnp.float32)      # (N, 3*inner)

    # rope tables (resident across grid): rows = [cos*scale, sign*sin*scale, cos, sign*sin]
    cos_q = rope_ref[0]                                    # (N, D)
    sin_q = rope_ref[1]
    cos_k = rope_ref[2]
    sin_k = rope_ref[3]

    def apply_rope(t, c, s):
        # rotate_half(t)*sin == concat([t2, t1]) * (sign*sin); sign is folded into s,
        # so no in-kernel negate is needed.
        rot = jnp.concatenate([t[:, D // 2:], t[:, :D // 2]], axis=-1)
        return t * c + rot * s

    qk_dims = (((1,), (1,)), ((), ()))                     # q @ k^T without transpose

    head_outs = []
    for h in range(H):                                     # static unroll (H is small)
        q = apply_rope(qkv[:, h * D:(h + 1) * D], cos_q, sin_q)          # pre-scaled
        k = apply_rope(qkv[:, inner + h * D:inner + (h + 1) * D], cos_k, sin_k)
        v = qkv[:, 2 * inner + h * D:2 * inner + (h + 1) * D]

        s = lax.dot_general(q.astype(jnp.bfloat16), k.astype(jnp.bfloat16),
                            dimension_numbers=qk_dims,
                            preferred_element_type=jnp.float32)          # (N, N)
        s = s - jnp.max(s, axis=-1, keepdims=True)
        p = jnp.exp(s)
        p = p * pl.reciprocal(jnp.sum(p, axis=-1, keepdims=True), approx=True)
        head_outs.append(
            jnp.dot(p.astype(jnp.bfloat16), v.astype(jnp.bfloat16),
                    preferred_element_type=jnp.float32))                 # (N, D)

    o = jnp.concatenate(head_outs, axis=-1)                # (N, inner)

    # ---- fused output projection (to_out) ----
    out = jnp.dot(o.astype(jnp.bfloat16), wo_ref[...].astype(jnp.bfloat16),
                  preferred_element_type=jnp.float32) + bo_ref[...]
    o_ref[0] = out.astype(o_ref.dtype)


def attention_forward(x, params, num_heads, dim_head, pos):
    """x: (B, N, dim); pos: rotary embedding angles (N, dim_head)."""
    B, N, dim = x.shape
    D = dim_head
    inner = num_heads * dim_head
    scale = dim_head ** (-0.5)

    # Merge to_q and to_kv into one (dim, 3*inner) projection: columns = [q | k | v].
    wqkv = jnp.concatenate([params["wq"], params["wkv"]], axis=1)

    # Pre-fold softmax scale (into q's tables) and rotate_half sign (into sin).
    cos = jnp.cos(pos)
    sin = jnp.sin(pos)
    sign = jnp.concatenate([-jnp.ones((D // 2,), jnp.float32),
                            jnp.ones((D // 2,), jnp.float32)])
    sin_s = sin * sign
    rope = jnp.stack([cos * scale, sin_s * scale, cos, sin_s], axis=0)   # (4, N, D)

    kernel = functools.partial(_fused_attention_kernel,
                               num_heads=num_heads, dim_head=dim_head)

    return pl.pallas_call(
        kernel,
        out_shape=jax.ShapeDtypeStruct((B, N, dim), x.dtype),
        grid=(B,),
        in_specs=[
            pl.BlockSpec((1, N, dim), lambda b: (b, 0, 0)),        # x (per batch)
            pl.BlockSpec((dim, 3 * inner), lambda b: (0, 0)),      # merged QKV weight
            pl.BlockSpec((inner, dim), lambda b: (0, 0)),          # output weight
            pl.BlockSpec((1, dim), lambda b: (0, 0)),              # output bias
            pl.BlockSpec((4, N, D), lambda b: (0, 0, 0)),          # packed rope tables
        ],
        out_specs=pl.BlockSpec((1, N, dim), lambda b: (b, 0, 0)),
        compiler_params=pltpu.CompilerParams(
            dimension_semantics=("parallel",)),
    )(x, wqkv, params["wo"], params["bo"].reshape(1, dim), rope)


# ----------------------------- Pure-JAX reference ----------------------------
def reference_forward(x, params, num_heads, dim_head, pos):
    B, N, dim = x.shape
    inner = num_heads * dim_head
    q = x @ params["wq"]
    kv = x @ params["wkv"]
    k, v = kv[..., :inner], kv[..., inner:]

    def heads(t):
        return t.reshape(B, N, num_heads, dim_head).transpose(0, 2, 1, 3)

    q, k, v = heads(q), heads(k), heads(v)

    cos, sin = jnp.cos(pos), jnp.sin(pos)

    def rotate_half(t):
        d2 = t.shape[-1] // 2
        return jnp.concatenate([-t[..., d2:], t[..., :d2]], axis=-1)

    q = q * cos + rotate_half(q) * sin
    k = k * cos + rotate_half(k) * sin

    s = jnp.einsum("bhnd,bhmd->bhnm", q, k) * (dim_head ** -0.5)
    p = jax.nn.softmax(s, axis=-1)
    o = jnp.einsum("bhnm,bhmd->bhnd", p, v)
    o = o.transpose(0, 2, 1, 3).reshape(B, N, inner)
    return o @ params["wo"] + params["bo"]


# ---------------------------------- Main --------------------------------------
if __name__ == "__main__":
    B, N, dim = 2, 8, 32
    num_heads, dim_head = 2, 16
    inner = num_heads * dim_head

    key = jax.random.PRNGKey(0)
    kx, kq, kkv, ko, kb = jax.random.split(key, 5)

    x = jax.random.normal(kx, (B, N, dim), dtype=jnp.float32)

    # Parameters stored as (in, out) matrices (i.e. PyTorch W.T); qkv_bias=False.
    params = {
        "wq":  jax.random.normal(kq,  (dim, inner), dtype=jnp.float32) * 0.05,
        "wkv": jax.random.normal(kkv, (dim, 2 * inner), dtype=jnp.float32) * 0.05,
        "wo":  jax.random.normal(ko,  (inner, dim), dtype=jnp.float32) * 0.05,
        "bo":  jax.random.normal(kb,  (dim,), dtype=jnp.float32) * 0.05,
    }

    # Rotary embedding angles: (N, dim_head), standard repeated-frequency layout.
    inv_freq = 1.0 / (10000.0 ** (jnp.arange(0, dim_head, 2, dtype=jnp.float32) / dim_head))
    t = jnp.arange(N, dtype=jnp.float32)
    angles = jnp.einsum("n,f->nf", t, inv_freq)            # (N, dim_head//2)
    pos = jnp.concatenate([angles, angles], axis=-1)       # (N, dim_head)

    out = attention_forward(x, params, num_heads, dim_head, pos)
    out = jax.block_until_ready(out)

    ref = reference_forward(x, params, num_heads, dim_head, pos)
    assert out.shape == (B, N, dim)
    # bf16 MXU operands + approx reciprocal vs. f32 reference -> relaxed tolerance.
    assert jnp.allclose(out, ref, atol=1e-2, rtol=1e-2), (
        float(jnp.max(jnp.abs(out - ref))))

    print("KERNEL_OK")
</pallas_src>

<mosaic_0001>
module attributes {stable_mosaic.version = 11 : i64} {
  func.func @_fused_attention_kernel(%arg0: i32, %arg1: memref<1x8x32xf32, #tpu.memory_space<vmem>>, %arg2: memref<32x96xf32, #tpu.memory_space<vmem>>, %arg3: memref<32x32xf32, #tpu.memory_space<vmem>>, %arg4: memref<1x32xf32, #tpu.memory_space<vmem>>, %arg5: memref<4x8x16xf32, #tpu.memory_space<vmem>>, %arg6: memref<1x8x32xf32, #tpu.memory_space<vmem>>) attributes {dimension_semantics = [#tpu.dimension_semantics<parallel>], iteration_bounds = array<i64: 2>, scalar_prefetch = 0 : i64, scratch_operands = 0 : i64, tpu.core_type = #tpu.core_type<tc>, window_params = [{transform_indices = @transform_0, window_bounds = array<i64: 1, 8, 32>}, {pipeline_mode = #tpu.pipeline_mode<synchronous>, transform_indices = @transform_1, window_bounds = array<i64: 32, 96>}, {pipeline_mode = #tpu.pipeline_mode<synchronous>, transform_indices = @transform_2, window_bounds = array<i64: 32, 32>}, {pipeline_mode = #tpu.pipeline_mode<synchronous>, transform_indices = @transform_3, window_bounds = array<i64: 1, 32>}, {pipeline_mode = #tpu.pipeline_mode<synchronous>, transform_indices = @transform_4, window_bounds = array<i64: 4, 8, 16>}, {transform_indices = @transform_5, window_bounds = array<i64: 1, 8, 32>}]} {
    %c0 = arith.constant 0 : index
    %c0_0 = arith.constant 0 : index
    %c0_1 = arith.constant 0 : index
    %0 = vector.load %arg1[%c0, %c0_0, %c0_1] : memref<1x8x32xf32, #tpu.memory_space<vmem>>, vector<1x8x32xf32>
    %1 = vector.shape_cast %0 : vector<1x8x32xf32> to vector<8x32xf32>
    %2 = arith.truncf %1 : vector<8x32xf32> to vector<8x32xbf16>
    %c0_2 = arith.constant 0 : index
    %c0_3 = arith.constant 0 : index
    %3 = vector.load %arg2[%c0_2, %c0_3] : memref<32x96xf32, #tpu.memory_space<vmem>>, vector<32x96xf32>
    %4 = arith.truncf %3 : vector<32x96xf32> to vector<32x96xbf16>
    %cst = arith.constant dense<0.000000e+00> : vector<8x96xf32>
    %5 = tpu.matmul %2, %4, %cst {dimension_numbers = #tpu.dot_dimension_numbers<[1], [0], [0], [1], [0, 0, 1, 1], [], []>} : vector<8x32xbf16>, vector<32x96xbf16>, vector<8x96xf32> -> vector<8x96xf32>
    %c0_4 = arith.constant 0 : index
    %c0_5 = arith.constant 0 : index
    %c0_6 = arith.constant 0 : index
    %6 = vector.load %arg5[%c0_4, %c0_5, %c0_6] : memref<4x8x16xf32, #tpu.memory_space<vmem>>, vector<1x8x16xf32>
    %7 = vector.shape_cast %6 : vector<1x8x16xf32> to vector<8x16xf32>
    %c1 = arith.constant 1 : index
    %c0_7 = arith.constant 0 : index
    %c0_8 = arith.constant 0 : index
    %8 = vector.load %arg5[%c1, %c0_7, %c0_8] : memref<4x8x16xf32, #tpu.memory_space<vmem>>, vector<1x8x16xf32>
    %9 = vector.shape_cast %8 : vector<1x8x16xf32> to vector<8x16xf32>
    %c2 = arith.constant 2 : index
    %c0_9 = arith.constant 0 : index
    %c0_10 = arith.constant 0 : index
    %10 = vector.load %arg5[%c2, %c0_9, %c0_10] : memref<4x8x16xf32, #tpu.memory_space<vmem>>, vector<1x8x16xf32>
    %11 = vector.shape_cast %10 : vector<1x8x16xf32> to vector<8x16xf32>
    %c3 = arith.constant 3 : index
    %c0_11 = arith.constant 0 : index
    %c0_12 = arith.constant 0 : index
    %12 = vector.load %arg5[%c3, %c0_11, %c0_12] : memref<4x8x16xf32, #tpu.memory_space<vmem>>, vector<1x8x16xf32>
    %13 = vector.shape_cast %12 : vector<1x8x16xf32> to vector<8x16xf32>
    %14 = vector.extract_strided_slice %5 {offsets = [0, 0], sizes = [8, 16], strides = [1, 1]} : vector<8x96xf32> to vector<8x16xf32>
    %15 = vector.extract_strided_slice %14 {offsets = [0, 8], sizes = [8, 8], strides = [1, 1]} : vector<8x16xf32> to vector<8x8xf32>
    %16 = vector.extract_strided_slice %14 {offsets = [0, 0], sizes = [8, 8], strides = [1, 1]} : vector<8x16xf32> to vector<8x8xf32>
    %17 = tpu.concatenate %15, %16 in 1 : vector<8x8xf32>, vector<8x8xf32> -> vector<8x16xf32>
    %18 = arith.mulf %14, %7 : vector<8x16xf32>
    %19 = arith.mulf %17, %9 : vector<8x16xf32>
    %20 = arith.addf %18, %19 : vector<8x16xf32>
    %21 = vector.extract_strided_slice %5 {offsets = [0, 32], sizes = [8, 16], strides = [1, 1]} : vector<8x96xf32> to vector<8x16xf32>
    %22 = vector.extract_strided_slice %21 {offsets = [0, 8], sizes = [8, 8], strides = [1, 1]} : vector<8x16xf32> to vector<8x8xf32>
    %23 = vector.extract_strided_slice %21 {offsets = [0, 0], sizes = [8, 8], strides = [1, 1]} : vector<8x16xf32> to vector<8x8xf32>
    %24 = tpu.concatenate %22, %23 in 1 : vector<8x8xf32>, vector<8x8xf32> -> vector<8x16xf32>
    %25 = arith.mulf %21, %11 : vector<8x16xf32>
    %26 = arith.mulf %24, %13 : vector<8x16xf32>
    %27 = arith.addf %25, %26 : vector<8x16xf32>
    %28 = vector.extract_strided_slice %5 {offsets = [0, 64], sizes = [8, 16], strides = [1, 1]} : vector<8x96xf32> to vector<8x16xf32>
    %29 = arith.truncf %20 : vector<8x16xf32> to vector<8x16xbf16>
    %30 = arith.truncf %27 : vector<8x16xf32> to vector<8x16xbf16>
    %cst_13 = arith.constant dense<0.000000e+00> : vector<8x8xf32>
    %31 = tpu.matmul %29, %30, %cst_13 {dimension_numbers = #tpu.dot_dimension_numbers<[1], [1], [0], [0], [0, 0, 1, 0], [], []>} : vector<8x16xbf16>, vector<8x16xbf16>, vector<8x8xf32> -> vector<8x8xf32>
    %cst_14 = arith.constant dense<0xFF800000> : vector<8xf32>
    %32 = vector.multi_reduction <maximumf>, %31, %cst_14 [1] : vector<8x8xf32> to vector<8xf32>
    %33 = vector.shape_cast %32 : vector<8xf32> to vector<8x1xf32>
    %34 = vector.broadcast %33 : vector<8x1xf32> to vector<8x8xf32>
    %35 = arith.subf %31, %34 : vector<8x8xf32>
    %36 = math.exp %35 : vector<8x8xf32>
    %cst_15 = arith.constant dense<0.000000e+00> : vector<8xf32>
    %37 = vector.multi_reduction <add>, %36, %cst_15 [1] : vector<8x8xf32> to vector<8xf32>
    %38 = vector.shape_cast %37 : vector<8xf32> to vector<8x1xf32>
    %39 = tpu.reciprocal %38 {approx = true} : vector<8x1xf32> -> vector<8x1xf32>
    %40 = vector.broadcast %39 : vector<8x1xf32> to vector<8x8xf32>
    %41 = arith.mulf %36, %40 : vector<8x8xf32>
    %42 = arith.truncf %41 : vector<8x8xf32> to vector<8x8xbf16>
    %43 = arith.truncf %28 : vector<8x16xf32> to vector<8x16xbf16>
    %cst_16 = arith.constant dense<0.000000e+00> : vector<8x16xf32>
    %44 = tpu.matmul %42, %43, %cst_16 {dimension_numbers = #tpu.dot_dimension_numbers<[1], [0], [0], [1], [0, 0, 1, 1], [], []>} : vector<8x8xbf16>, vector<8x16xbf16>, vector<8x16xf32> -> vector<8x16xf32>
    %45 = vector.extract_strided_slice %5 {offsets = [0, 16], sizes = [8, 16], strides = [1, 1]} : vector<8x96xf32> to vector<8x16xf32>
    %46 = vector.extract_strided_slice %45 {offsets = [0, 8], sizes = [8, 8], strides = [1, 1]} : vector<8x16xf32> to vector<8x8xf32>
    %47 = vector.extract_strided_slice %45 {offsets = [0, 0], sizes = [8, 8], strides = [1, 1]} : vector<8x16xf32> to vector<8x8xf32>
    %48 = tpu.concatenate %46, %47 in 1 : vector<8x8xf32>, vector<8x8xf32> -> vector<8x16xf32>
    %49 = arith.mulf %45, %7 : vector<8x16xf32>
    %50 = arith.mulf %48, %9 : vector<8x16xf32>
    %51 = arith.addf %49, %50 : vector<8x16xf32>
    %52 = vector.extract_strided_slice %5 {offsets = [0, 48], sizes = [8, 16], strides = [1, 1]} : vector<8x96xf32> to vector<8x16xf32>
    %53 = vector.extract_strided_slice %52 {offsets = [0, 8], sizes = [8, 8], strides = [1, 1]} : vector<8x16xf32> to vector<8x8xf32>
    %54 = vector.extract_strided_slice %52 {offsets = [0, 0], sizes = [8, 8], strides = [1, 1]} : vector<8x16xf32> to vector<8x8xf32>
    %55 = tpu.concatenate %53, %54 in 1 : vector<8x8xf32>, vector<8x8xf32> -> vector<8x16xf32>
    %56 = arith.mulf %52, %11 : vector<8x16xf32>
    %57 = arith.mulf %55, %13 : vector<8x16xf32>
    %58 = arith.addf %56, %57 : vector<8x16xf32>
    %59 = vector.extract_strided_slice %5 {offsets = [0, 80], sizes = [8, 16], strides = [1, 1]} : vector<8x96xf32> to vector<8x16xf32>
    %60 = arith.truncf %51 : vector<8x16xf32> to vector<8x16xbf16>
    %61 = arith.truncf %58 : vector<8x16xf32> to vector<8x16xbf16>
    %cst_17 = arith.constant dense<0.000000e+00> : vector<8x8xf32>
    %62 = tpu.matmul %60, %61, %cst_17 {dimension_numbers = #tpu.dot_dimension_numbers<[1], [1], [0], [0], [0, 0, 1, 0], [], []>} : vector<8x16xbf16>, vector<8x16xbf16>, vector<8x8xf32> -> vector<8x8xf32>
    %cst_18 = arith.constant dense<0xFF800000> : vector<8xf32>
    %63 = vector.multi_reduction <maximumf>, %62, %cst_18 [1] : vector<8x8xf32> to vector<8xf32>
    %64 = vector.shape_cast %63 : vector<8xf32> to vector<8x1xf32>
    %65 = vector.broadcast %64 : vector<8x1xf32> to vector<8x8xf32>
    %66 = arith.subf %62, %65 : vector<8x8xf32>
    %67 = math.exp %66 : vector<8x8xf32>
    %cst_19 = arith.constant dense<0.000000e+00> : vector<8xf32>
    %68 = vector.multi_reduction <add>, %67, %cst_19 [1] : vector<8x8xf32> to vector<8xf32>
    %69 = vector.shape_cast %68 : vector<8xf32> to vector<8x1xf32>
    %70 = tpu.reciprocal %69 {approx = true} : vector<8x1xf32> -> vector<8x1xf32>
    %71 = vector.broadcast %70 : vector<8x1xf32> to vector<8x8xf32>
    %72 = arith.mulf %67, %71 : vector<8x8xf32>
    %73 = arith.truncf %72 : vector<8x8xf32> to vector<8x8xbf16>
    %74 = arith.truncf %59 : vector<8x16xf32> to vector<8x16xbf16>
    %cst_20 = arith.constant dense<0.000000e+00> : vector<8x16xf32>
    %75 = tpu.matmul %73, %74, %cst_20 {dimension_numbers = #tpu.dot_dimension_numbers<[1], [0], [0], [1], [0, 0, 1, 1], [], []>} : vector<8x8xbf16>, vector<8x16xbf16>, vector<8x16xf32> -> vector<8x16xf32>
    %76 = tpu.concatenate %44, %75 in 1 : vector<8x16xf32>, vector<8x16xf32> -> vector<8x32xf32>
    %77 = arith.truncf %76 : vector<8x32xf32> to vector<8x32xbf16>
    %c0_21 = arith.constant 0 : index
    %c0_22 = arith.constant 0 : index
    %78 = vector.load %arg3[%c0_21, %c0_22] : memref<32x32xf32, #tpu.memory_space<vmem>>, vector<32x32xf32>
    %79 = arith.truncf %78 : vector<32x32xf32> to vector<32x32xbf16>
    %cst_23 = arith.constant dense<0.000000e+00> : vector<8x32xf32>
    %80 = tpu.matmul %77, %79, %cst_23 {dimension_numbers = #tpu.dot_dimension_numbers<[1], [0], [0], [1], [0, 0, 1, 1], [], []>} : vector<8x32xbf16>, vector<32x32xbf16>, vector<8x32xf32> -> vector<8x32xf32>
    %c0_24 = arith.constant 0 : index
    %c0_25 = arith.constant 0 : index
    %81 = vector.load %arg4[%c0_24, %c0_25] : memref<1x32xf32, #tpu.memory_space<vmem>>, vector<1x32xf32>
    %82 = vector.broadcast %81 : vector<1x32xf32> to vector<8x32xf32>
    %83 = arith.addf %80, %82 : vector<8x32xf32>
    %c0_26 = arith.constant 0 : index
    %c0_27 = arith.constant 0 : index
    %c0_28 = arith.constant 0 : index
    %84 = vector.load %arg6[%c0_26, %c0_27, %c0_28] : memref<1x8x32xf32, #tpu.memory_space<vmem>>, vector<1x8x32xf32>
    %85 = vector.shape_cast %84 : vector<1x8x32xf32> to vector<8x32xf32>
    %86 = vector.shape_cast %83 : vector<8x32xf32> to vector<1x8x32xf32>
    tpu.vector_store %arg6[%c0_26, %c0_27, %c0_28], %86 {strides = array<i32>} : memref<1x8x32xf32, #tpu.memory_space<vmem>>, vector<1x8x32xf32>,
    return
  }
  func.func @transform_0(%arg0: i32) -> (i32, i32, i32) {
    %c0_i32 = arith.constant 0 : i32
    %c0_i32_0 = arith.constant 0 : i32
    %c0_i32_1 = arith.constant 0 : i32
    return %arg0, %c0_i32, %c0_i32_0 : i32, i32, i32
  }
  func.func @transform_1(%arg0: i32) -> (i32, i32) {
    %c0_i32 = arith.constant 0 : i32
    %c0_i32_0 = arith.constant 0 : i32
    %c0_i32_1 = arith.constant 0 : i32
    return %c0_i32, %c0_i32_0 : i32, i32
  }
  func.func @transform_2(%arg0: i32) -> (i32, i32) {
    %c0_i32 = arith.constant 0 : i32
    %c0_i32_0 = arith.constant 0 : i32
    %c0_i32_1 = arith.constant 0 : i32
    return %c0_i32, %c0_i32_0 : i32, i32
  }
  func.func @transform_3(%arg0: i32) -> (i32, i32) {
    %c0_i32 = arith.constant 0 : i32
    %c0_i32_0 = arith.constant 0 : i32
    %c0_i32_1 = arith.constant 0 : i32
    return %c0_i32, %c0_i32_0 : i32, i32
  }
  func.func @transform_4(%arg0: i32) -> (i32, i32, i32) {
    %c0_i32 = arith.constant 0 : i32
    %c0_i32_0 = arith.constant 0 : i32
    %c0_i32_1 = arith.constant 0 : i32
    %c0_i32_2 = arith.constant 0 : i32
    return %c0_i32, %c0_i32_0, %c0_i32_1 : i32, i32, i32
  }
  func.func @transform_5(%arg0: i32) -> (i32, i32, i32) {
    %c0_i32 = arith.constant 0 : i32
    %c0_i32_0 = arith.constant 0 : i32
    %c0_i32_1 = arith.constant 0 : i32
    return %arg0, %c0_i32, %c0_i32_0 : i32, i32, i32
  }
}

</mosaic_0001>

<llo_original>
// kernel: tpu_custom_call.1
$region0: #{tpu_custom_call.1}
  #allocation0 [shape = 'u32[]', space=smem, size = 0x4, offset = 0x4, fixed_abs, tag = 'smem constant byte address 0x4 - core index']
  #allocation1 [shape = 'u32[144,128]{1,0:T(1,128)}', space=vmem, size = 0x12000, scoped, tag = 'internal scratch']
  %s0 = inlined_call_operand.hbm [shape: f32[2,8,32], index: 0, kind: input, shape index: {}]
  %s1 = inlined_call_operand.hbm [shape: f32[32,96], index: 1, kind: input, shape index: {}]
  %s2 = inlined_call_operand.hbm [shape: f32[32,32], index: 2, kind: input, shape index: {}]
  %s3 = inlined_call_operand.vmem [shape: f32[1,32], index: 3, kind: input, shape index: {}]
  %s4 = inlined_call_operand.hbm [shape: f32[4,8,16], index: 4, kind: input, shape index: {}]
  %s5 = inlined_call_operand.hbm [shape: f32[2,8,32], index: 5, kind: output, shape index: {}]
  %s6 = sld [smem:[#allocation0]]
  $region69: #{tpu_custom_call.1} parent=0
    _
  %s8 = ssub.s32 1, %s6
  %s9 = scalar_select 0, %s8, %s6
  $region1: #{tpu_custom_call.1} parent=0
    #allocation2 [shape = 'u8[8192]{0}', space=vmem, size = 0x2000, scoped, tag = 'input window, operand 0']
    #allocation3 [shape = 's32[2]{0}', space=sflag, size = 0x8, scoped, tag = 'scoped memory for tpu_custom_call.1']
    #allocation4 [shape = 's32[2]{0}', space=sflag, size = 0x8, scoped, tag = 'scoped memory for tpu_custom_call.1']
    #allocation5 [shape = 'u8[16384]{0}', space=vmem, size = 0x4000, scoped, tag = 'input window, operand 1, single buffered']
    #allocation6 [shape = 's32[1]{0}', space=sflag, size = 0x4, scoped, tag = 'scoped memory for tpu_custom_call.1']
    #allocation7 [shape = 'u8[16384]{0}', space=vmem, size = 0x4000, scoped, tag = 'input window, operand 2, single buffered']
    #allocation8 [shape = 'u8[16384]{0}', space=vmem, size = 0x4000, scoped, tag = 'input window, operand 4, single buffered']
    #allocation9 [shape = 's32[1]{0}', space=sflag, size = 0x4, scoped, tag = 'scoped memory for tpu_custom_call.1']
    #allocation10 [shape = 'u8[8192]{0}', space=vmem, size = 0x2000, scoped, tag = 'output window, operand 0']
    %10 = vsyncpa [#allocation3], 0
    %s11 = scalar_lea.sflag [#allocation3], 1
    %12 = vsyncpa %s11, 0
    %13 = vsyncpa [#allocation6], 0
    %14 = vsyncpa [#allocation9], 0
    %15 = vsyncpa [#allocation4], 0
    %s16 = scalar_lea.sflag [#allocation4], 1
    %17 = vsyncpa %s16, 0
    loop: start=0, step=1, limit=4
    $region2: #{tpu_custom_call.1} parent=1 // loop_pre_header
      _
    $region3: #{tpu_custom_call.1} parent=1 // loop_header
      %s19 = sphi 0, %s23
      %p20 = scmp.ge.s32.totalorder %s19, 4
      %s29 = sphi 0, %s31
      %s32 = sphi 0, %s29
      %s33 = sphi 0, %s32
      %s49 = sphi 0, %s33
      %s53 = sphi 0, %s53
      %s55 = sphi 0, %s53
      %s56 = sphi 0, %s55
      %s70 = sphi 0, %s56
      %s74 = sphi 0, %s74
      %s76 = sphi 0, %s74
      %s77 = sphi 0, %s76
      %s91 = sphi 0, %s77
      %s95 = sphi 0, %s95
      %s97 = sphi 0, %s95
      %s98 = sphi 0, %s97
      %s112 = sphi 0, %s98
      %s116 = sphi 0, %s116
      %s118 = sphi 0, %s116
      %s119 = sphi 0, %s118
      %s133 = sphi 0, %s119
      %s139 = sphi 0, %s141
      %s142 = sphi 0, %s139
      %s143 = sphi 0, %s142
      %s159 = sphi 0, %s143
    $region4: #{tpu_custom_call.1} parent=1 // loop_header_branch
      %22 = sbr.rel (%p20) target = $region8
    $region5: #{tpu_custom_call.1} parent=1 // loop_body
      %s24 = ssub.s32 %s19, 1
      %s25 = ssub.s32 %s19, 2
      %s26 = sadd.s32 %s19, 1
      %s27 = ssub.s32 %s19, %s26
      %p28 = scmp.eq.s32.totalorder %s27, 0
      %s30 = sadd.s32 %s29, 1
      %s31 = scalar_select %p28, %s29, %s30
      %p34 = pneg %p28
      %p35 = scmp.eq.s32.totalorder %s19, 1
      %p36 = por %p34, %p35
      %p37 = scmp.ne.s32.totalorder %s29, %s32
      %p38 = scmp.eq.s32.totalorder %s19, 0
      %p39 = por %p37, %p38
      %p40 = scmp.ne.s32.totalorder %s29, %s32
      %p41 = scmp.eq.s32.totalorder %s24, 1
      %p42 = por %p40, %p41
      %p43 = scmp.ne.s32.totalorder %s32, %s33
      %p44 = scmp.eq.s32.totalorder %s24, 0
      %p45 = por %p43, %p44
      %p46 = scmp.ne.s32.totalorder %s32, %s33
      %p47 = scmp.eq.s32.totalorder %s25, 1
      %p48 = por %p46, %p47
      %p50 = scmp.ne.s32.totalorder %s33, %s49
      %p51 = scmp.eq.s32.totalorder %s25, 0
      %p52 = por %p50, %p51
      %s54 = sadd.s32 %s53, 1
      %p57 = scmp.eq.s32.totalorder %s19, 1
      %p58 = scmp.ne.s32.totalorder %s53, %s55
      %p59 = scmp.eq.s32.totalorder %s19, 0
      %p60 = por %p58, %p59
      %p61 = scmp.ne.s32.totalorder %s53, %s55
      %p62 = scmp.eq.s32.totalorder %s24, 1
      %p63 = por %p61, %p62
      %p64 = scmp.ne.s32.totalorder %s55, %s56
      %p65 = scmp.eq.s32.totalorder %s24, 0
      %p66 = por %p64, %p65
      %p67 = scmp.ne.s32.totalorder %s55, %s56
      %p68 = scmp.eq.s32.totalorder %s25, 1
      %p69 = por %p67, %p68
      %p71 = scmp.ne.s32.totalorder %s56, %s70
      %p72 = scmp.eq.s32.totalorder %s25, 0
      %p73 = por %p71, %p72
      %s75 = sadd.s32 %s74, 1
      %p78 = scmp.eq.s32.totalorder %s19, 1
      %p79 = scmp.ne.s32.totalorder %s74, %s76
      %p80 = scmp.eq.s32.totalorder %s19, 0
      %p81 = por %p79, %p80
      %p82 = scmp.ne.s32.totalorder %s74, %s76
      %p83 = scmp.eq.s32.totalorder %s24, 1
      %p84 = por %p82, %p83
      %p85 = scmp.ne.s32.totalorder %s76, %s77
      %p86 = scmp.eq.s32.totalorder %s24, 0
      %p87 = por %p85, %p86
      %p88 = scmp.ne.s32.totalorder %s76, %s77
      %p89 = scmp.eq.s32.totalorder %s25, 1
      %p90 = por %p88, %p89
      %p92 = scmp.ne.s32.totalorder %s77, %s91
      %p93 = scmp.eq.s32.totalorder %s25, 0
      %p94 = por %p92, %p93
      %s96 = sadd.s32 %s95, 1
      %p99 = scmp.eq.s32.totalorder %s19, 1
      %p100 = scmp.ne.s32.totalorder %s95, %s97
      %p101 = scmp.eq.s32.totalorder %s19, 0
      %p102 = por %p100, %p101
      %p103 = scmp.ne.s32.totalorder %s95, %s97
      %p104 = scmp.eq.s32.totalorder %s24, 1
      %p105 = por %p103, %p104
      %p106 = scmp.ne.s32.totalorder %s97, %s98
      %p107 = scmp.eq.s32.totalorder %s24, 0
      %p108 = por %p106, %p107
      %p109 = scmp.ne.s32.totalorder %s97, %s98
      %p110 = scmp.eq.s32.totalorder %s25, 1
      %p111 = por %p109, %p110
      %p113 = scmp.ne.s32.totalorder %s98, %s112
      %p114 = scmp.eq.s32.totalorder %s25, 0
      %p115 = por %p113, %p114
      %s117 = sadd.s32 %s116, 1
      %p120 = scmp.eq.s32.totalorder %s19, 1
      %p121 = scmp.ne.s32.totalorder %s116, %s118
      %p122 = scmp.eq.s32.totalorder %s19, 0
      %p123 = por %p121, %p122
      %p124 = scmp.ne.s32.totalorder %s116, %s118
      %p125 = scmp.eq.s32.totalorder %s24, 1
      %p126 = por %p124, %p125
      %p127 = scmp.ne.s32.totalorder %s118, %s119
      %p128 = scmp.eq.s32.totalorder %s24, 0
      %p129 = por %p127, %p128
      %p130 = scmp.ne.s32.totalorder %s118, %s119
      %p131 = scmp.eq.s32.totalorder %s25, 1
      %p132 = por %p130, %p131
      %p134 = scmp.ne.s32.totalorder %s119, %s133
      %p135 = scmp.eq.s32.totalorder %s25, 0
      %p136 = por %p134, %p135
      %s137 = ssub.s32 %s19, %s26
      %p138 = scmp.eq.s32.totalorder %s137, 0
      %s140 = sadd.s32 %s139, 1
      %s141 = scalar_select %p138, %s139, %s140
      %p144 = pneg %p138
      %p145 = scmp.eq.s32.totalorder %s19, 1
      %p146 = por %p144, %p145
      %p147 = scmp.ne.s32.totalorder %s139, %s142
      %p148 = scmp.eq.s32.totalorder %s19, 0
      %p149 = por %p147, %p148
      %p150 = scmp.ne.s32.totalorder %s139, %s142
      %p151 = scmp.eq.s32.totalorder %s24, 1
      %p152 = por %p150, %p151
      %p153 = scmp.ne.s32.totalorder %s142, %s143
      %p154 = scmp.eq.s32.totalorder %s24, 0
      %p155 = por %p153, %p154
      %p156 = scmp.ne.s32.totalorder %s142, %s143
      %p157 = scmp.eq.s32.totalorder %s25, 1
      %p158 = por %p156, %p157
      %p160 = scmp.ne.s32.totalorder %s143, %s159
      %p161 = scmp.eq.s32.totalorder %s25, 0
      %p162 = por %p160, %p161
      %p163 = scmp.le.s32.totalorder 1, %s19
      %p164 = scmp.lt.s32.totalorder %s19, 3
      %p165 = pnand %p163, %p164
      %p166 = pneg %p165
      // Predicated region
      $region9: #{tpu_custom_call.1} parent=5 // pred_check
        _
      $region10: #{tpu_custom_call.1} parent=5 // pred_check_branch
        %168 = sbr.rel (%p165) target = $region12
      $region11: #{tpu_custom_call.1} parent=5 // pred_region
        %s169 = ssub.s32 %s19, 1
        // Predicated region
        $region13: #{tpu_custom_call.1} parent=11 // pred_check
          %p170 = pneg %p66
        $region14: #{tpu_custom_call.1} parent=11 // pred_check_branch
          %172 = sbr.rel (%p170) target = $region16
        $region15: #{tpu_custom_call.1} parent=11 // pred_region
          %s174 = ssub.s32 512, 512
          %175 = vsyncadd [#allocation6], %s174
          %s176 = sshll.u32 [#allocation5], 4
          %s177 = int_to_ptr.vmem [resolvable:$true] %s176
          %182 = dma.hbm_to_vmem [thread:$0]  %s1, 512, %s177, [#allocation6], 128, 128, 8
        $region16: #{tpu_custom_call.1} parent=11 // pred_fallthru
          _
        // Predicated region
        $region17: #{tpu_custom_call.1} parent=11 // pred_check
          %p183 = pneg %p87
        $region18: #{tpu_custom_call.1} parent=11 // pred_check_branch
          %185 = sbr.rel (%p183) target = $region20
        $region19: #{tpu_custom_call.1} parent=11 // pred_region
          %s187 = ssub.s32 512, 512
          %188 = vsyncadd [#allocation6], %s187
          %s189 = sshll.u32 [#allocation7], 4
          %s190 = int_to_ptr.vmem [resolvable:$true] %s189
          %195 = dma.hbm_to_vmem [thread:$0]  %s2, 512, %s190, [#allocation6], 128, 128, 8
        $region20: #{tpu_custom_call.1} parent=11 // pred_fallthru
          _
        // Predicated region
        $region21: #{tpu_custom_call.1} parent=11 // pred_check
          %p196 = pneg %p108
        $region22: #{tpu_custom_call.1} parent=11 // pred_check_branch
          %198 = sbr.rel (%p196) target = $region24
        $region23: #{tpu_custom_call.1} parent=11 // pred_region
          _
        $region24: #{tpu_custom_call.1} parent=11 // pred_fallthru
          _
        // Predicated region
        $region25: #{tpu_custom_call.1} parent=11 // pred_check
          %p199 = pneg %p129
        $region26: #{tpu_custom_call.1} parent=11 // pred_check_branch
          %201 = sbr.rel (%p199) target = $region28
        $region27: #{tpu_custom_call.1} parent=11 // pred_region
          %s203 = ssub.s32 512, 512
          %204 = vsyncadd [#allocation9], %s203
          %s205 = sshll.u32 [#allocation8], 4
          %s206 = int_to_ptr.vmem [resolvable:$true] %s205
          %211 = dma.hbm_to_vmem [thread:$0]  %s4, 512, %s206, [#allocation9], 128, 128, 8
        $region28: #{tpu_custom_call.1} parent=11 // pred_fallthru
          _
      $region12: #{tpu_custom_call.1} parent=5 // pred_fallthru
        _
      %p212 = scmp.lt.s32.totalorder %s19, 2
      // Predicated region
      $region29: #{tpu_custom_call.1} parent=5 // pred_check
        %p213 = pneg %p212
      $region30: #{tpu_custom_call.1} parent=5 // pred_check_branch
        %215 = sbr.rel (%p213) target = $region32
      $region31: #{tpu_custom_call.1} parent=5 // pred_region
        // Predicated region
        $region33: #{tpu_custom_call.1} parent=31 // pred_check
          %p216 = pneg %p39
        $region34: #{tpu_custom_call.1} parent=31 // pred_check_branch
          %218 = sbr.rel (%p216) target = $region36
        $region35: #{tpu_custom_call.1} parent=31 // pred_region
          %s219 = sand.u32 %s29, 1
          %s220 = scalar_lea.sflag [#allocation3], %s219
          %s221 = sand.u32 %s29, 1
          %s222 = smul.addr %s221, 8
          %s223 = scalar_lea.vmem [#allocation2], %s222
          %s225 = ssub.s32 128, 128
          %226 = vsyncadd %s220, %s225
          %s227 = smul.addr %s19, 128
          %s228 = scalar_lea.hbm %s0, %s227
          %s230 = sshll.u32 %s223, 4
          %s231 = int_to_ptr.vmem [resolvable:$true] %s230
          %233 = dma.hbm_to_vmem [thread:$0]  %s228, 128, %s231, %s220
        $region36: #{tpu_custom_call.1} parent=31 // pred_fallthru
          _
      $region32: #{tpu_custom_call.1} parent=5 // pred_fallthru
        _
      %p234 = scmp.le.s32.totalorder 1, %s19
      %p235 = scmp.lt.s32.totalorder %s19, 3
      %p236 = pnand %p234, %p235
      %p237 = pneg %p236
      // Predicated region
      $region37: #{tpu_custom_call.1} parent=5 // pred_check
        _
      $region38: #{tpu_custom_call.1} parent=5 // pred_check_branch
        %239 = sbr.rel (%p236) target = $region40
      $region39: #{tpu_custom_call.1} parent=5 // pred_region
        %s240 = ssub.s32 %s19, 1
        %s241 = sand.u32 %s32, 1
        %s242 = scalar_lea.sflag [#allocation3], %s241
        %s243 = sand.u32 %s32, 1
        %s244 = smul.addr %s243, 8
        %s245 = scalar_lea.vmem [#allocation2], %s244
        // Predicated region
        $region41: #{tpu_custom_call.1} parent=39 // pred_check
          %p246 = pneg %p45
        $region42: #{tpu_custom_call.1} parent=39 // pred_check_branch
          %248 = sbr.rel (%p246) target = $region44
        $region43: #{tpu_custom_call.1} parent=39 // pred_region
          %249 = dma.done %s242, 128
        $region44: #{tpu_custom_call.1} parent=39 // pred_fallthru
          _
        // Predicated region
        $region45: #{tpu_custom_call.1} parent=39 // pred_check
          %p250 = pneg %p66
        $region46: #{tpu_custom_call.1} parent=39 // pred_check_branch
          %252 = sbr.rel (%p250) target = $region48
        $region47: #{tpu_custom_call.1} parent=39 // pred_region
          %253 = dma.done [#allocation6], 512
        $region48: #{tpu_custom_call.1} parent=39 // pred_fallthru
          _
        // Predicated region
        $region49: #{tpu_custom_call.1} parent=39 // pred_check
          %p254 = pneg %p87
        $region50: #{tpu_custom_call.1} parent=39 // pred_check_branch
          %256 = sbr.rel (%p254) target = $region52
        $region51: #{tpu_custom_call.1} parent=39 // pred_region
          %257 = dma.done [#allocation6], 512
        $region52: #{tpu_custom_call.1} parent=39 // pred_fallthru
          _
        // Predicated region
        $region53: #{tpu_custom_call.1} parent=39 // pred_check
          %p258 = pneg %p129
        $region54: #{tpu_custom_call.1} parent=39 // pred_check_branch
          %260 = sbr.rel (%p258) target = $region56
        $region55: #{tpu_custom_call.1} parent=39 // pred_region
          %261 = dma.done [#allocation9], 512
        $region56: #{tpu_custom_call.1} parent=39 // pred_fallthru
          _
        %s262 = sand.u32 %s32, 1
        %s263 = scalar_lea.sflag [#allocation3], %s262
        %s264 = sand.u32 %s32, 1
        %s265 = smul.addr %s264, 8
        %s266 = scalar_lea.vmem [#allocation2], %s265
        %p267 = pneg %p45
        %p268 = pneg %p42
        %p269 = pneg %p66
        %p270 = pneg %p63
        %p271 = pneg %p87
        %p272 = pneg %p84
        %p273 = pneg %p108
        %p274 = pneg %p105
        %p275 = pneg %p129
        %p276 = pneg %p126
        %p277 = pneg %p155
        %p278 = pneg %p152
        %s279 = sand.u32 %s142, 1
        %s280 = scalar_lea.sflag [#allocation4], %s279
        %s281 = sand.u32 %s142, 1
        %s282 = smul.addr %s281, 8
        %s283 = scalar_lea.vmem [#allocation10], %s282
        %v285 = vld [vmem:[%s245] sm:$0xff]
        %v286 = vpack.c.bf16 %v285, %v285
        %v287 = vld [vmem:[#allocation5] sm:$0xff]
        %v288 = vld [vmem:[#allocation5 + $0x8] sm:$0xff]
        %v289 = vld [vmem:[#allocation5 + $0x10] sm:$0xff]
        %v290 = vld [vmem:[#allocation5 + $0x18] sm:$0xff]
        %v291 = vpack.c.bf16 %v288, %v287
        %v292 = vpack.c.bf16 %v290, %v289
        %vm293 = vcmask 261120
        %v295 = vsel %vm293, %v286, 0
        %297 = vmatprep.subr.bf16.mxu0 0
        %298 = vmatpush1.bf16.msra.mxu0 %v291
        %299 = vmatprep.subr.bf16.mxu0 0
        %300 = vmatpush1.bf16.msra.mxu0 %v292
        %301 = vmatprep.subr.bf16.mxu0 0
        %302 = vmatpush1.bf16.msra.mxu0 0
        %303 = vmatprep.subr.bf16.mxu0 0
        %304 = vmatpush1.bf16.msra.mxu0 0
        %305 = vmatprep.subr.bf16.mxu0 0
        %306 = vmatpush1.bf16.msra.mxu0 0
        %307 = vmatprep.subr.bf16.mxu0 0
        %308 = vmatpush1.bf16.msra.mxu0 0
        %309 = vmatprep.subr.bf16.mxu0 0
        %310 = vmatpush1.bf16.msra.mxu0 0
        %311 = vmatprep.subr.bf16.mxu0 0
        %312 = vmatpush1.bf16.msra.mxu0 0
        %313 = vmatprep.subr.bf16.mxu0 0
        %314 = vmatpush1.bf16.msra.mxu0 0
        %315 = vmatprep.subr.bf16.mxu0 0
        %316 = vmatpush1.bf16.msra.mxu0 0
        %317 = vmatprep.subr.bf16.mxu0 0
        %318 = vmatpush1.bf16.msra.mxu0 0
        %319 = vmatprep.subr.bf16.mxu0 0
        %320 = vmatpush1.bf16.msra.mxu0 0
        %321 = vmatprep.subr.bf16.mxu0 0
        %322 = vmatpush1.bf16.msra.mxu0 0
        %323 = vmatprep.subr.bf16.mxu0 0
        %324 = vmatpush1.bf16.msra.mxu0 0
        %325 = vmatprep.subr.bf16.mxu0 0
        %326 = vmatpush1.bf16.msra.mxu0 0
        %327 = vmatprep.subr.bf16.mxu0 0
        %328 = vmatpush1.bf16.msra.mxu0 0
        %329 = vmatprep.mubr.bf16.mxu0 0
        %330 = vmatmul.mubr.bf16.gmra.mrb[0].mxu0 %v295
        %v331 = vpop.f32.mrb[0].mxu0
        %v332 = vadd.f32 0.0, %v331
        %v333 = vpop.f32.mrb[0].mxu0
        %v334 = vpop.f32.mrb[0].mxu0
        %v335 = vpop.f32.mrb[0].mxu0
        %336 = vdwg.mxu0
        %v337 = vld [vmem:[#allocation8] sm:$0xff]
        %s338 = scalar_lea.vmem [#allocation8], 8
        %v339 = vld [vmem:[%s338] sm:$0xff]
        %s340 = scalar_lea.vmem [#allocation8], 16
        %v341 = vld [vmem:[%s340] sm:$0xff]
        %s342 = scalar_lea.vmem [#allocation8], 24
        %v343 = vld [vmem:[%s342] sm:$0xff]
        %345 = vrot.lane.b32.xlu0 %v332, 120
        %v346 = vpop.permute.xlu0 %345
        %348 = vrot.lane.b32.xlu0 %v332, 8
        %v349 = vpop.permute.xlu0 %348
        %vm351 = vcmask 64512
        %v352 = vsel %vm351, %v346, %v349
        %v353 = vmul.f32 %v332, %v337
        %v354 = vmul.f32 %v352, %v339
        %v355 = vadd.f32 %v353, %v354
        %356 = vrot.lane.b32.xlu0 %v332, 88
        %v357 = vpop.permute.xlu0 %356
        %359 = vrot.lane.b32.xlu0 %v332, 104
        %v360 = vpop.permute.xlu0 %359
        %v362 = vsel %vm351, %v357, %v360
        %364 = vrot.lane.b32.xlu0 %v341, 32
        %v365 = vpop.permute.xlu0 %364
        %v367 = vmul.f32 %v332, %v365
        %v368 = vmul.f32 %v362, %v343
        %370 = vrot.lane.b32.xlu0 %v368, 32
        %v371 = vpop.permute.xlu0 %370
        %v373 = vadd.f32 %v367, %v371
        %v374 = vpack.c.bf16 %v355, %v355
        %v375 = vpack.c.bf16 %v373, %v373
        %377 = vrot.lane.b32.xlu0 %v375, 96
        %v378 = vpop.permute.xlu0 %377
        %vm379 = vcmask 130048
        %v381 = vsel %vm379, %v374, 0
        %v384 = vsel %vm379, %v378, 0
        %386 = vmatprep.subr.bf16.mxu0 0
        %387 = vmatpush1.bf16.xpose.msra.mxu0 %v384
        %388 = vmatprep.subr.bf16.mxu0 0
        %389 = vmatpush1.bf16.xpose.msra.mxu0 0
        %390 = vmatprep.subr.bf16.mxu0 0
        %391 = vmatpush1.bf16.xpose.msra.mxu0 0
        %392 = vmatprep.subr.bf16.mxu0 0
        %393 = vmatpush1.bf16.xpose.msra.mxu0 0
        %394 = vmatprep.subr.bf16.mxu0 0
        %395 = vmatpush1.bf16.xpose.msra.mxu0 0
        %396 = vmatprep.subr.bf16.mxu0 0
        %397 = vmatpush1.bf16.xpose.msra.mxu0 0
        %398 = vmatprep.subr.bf16.mxu0 0
        %399 = vmatpush1.bf16.xpose.msra.mxu0 0
        %400 = vmatprep.subr.bf16.mxu0 0
        %401 = vmatpush1.bf16.xpose.msra.mxu0 0
        %402 = vmatprep.subr.bf16.mxu0 0
        %403 = vmatpush1.bf16.xpose.msra.mxu0 0
        %404 = vmatprep.subr.bf16.mxu0 0
        %405 = vmatpush1.bf16.xpose.msra.mxu0 0
        %406 = vmatprep.subr.bf16.mxu0 0
        %407 = vmatpush1.bf16.xpose.msra.mxu0 0
        %408 = vmatprep.subr.bf16.mxu0 0
        %409 = vmatpush1.bf16.xpose.msra.mxu0 0
        %410 = vmatprep.subr.bf16.mxu0 0
        %411 = vmatpush1.bf16.xpose.msra.mxu0 0
        %412 = vmatprep.subr.bf16.mxu0 0
        %413 = vmatpush1.bf16.xpose.msra.mxu0 0
        %414 = vmatprep.subr.bf16.mxu0 0
        %415 = vmatpush1.bf16.xpose.msra.mxu0 0
        %416 = vmatprep.subr.bf16.mxu0 0
        %417 = vmatpush1.bf16.xpose.msra.mxu0 0
        %418 = vmatprep.mubr.bf16.mxu0 0
        %419 = vmatmul.mubr.bf16.gmra.mrb[0].mxu0 %v381
        %v420 = vpop.f32.mrb[0].mxu0
        %v421 = vadd.f32 0.0, %v420
        %v422 = vpop.f32.mrb[0].mxu0
        %v423 = vpop.f32.mrb[0].mxu0
        %v424 = vpop.f32.mrb[0].mxu0
        %425 = vdwg.mxu0
        %v426 = vsel %vm351, %v421, -inf
        %427 = vmax.xlane.f32.xlu0 %v426
        %v428 = vpop.xlane.xlu0 %427
        %v429 = vsub.f32 %v421, %v428
        %v430 = vmul.f32 %v429, 1.442695
        %v431 = vpow.pop %v430
        %v432 = vsel %vm351, %v431, 0.0
        %433 = vadd.xlane.f32.xlu0 %v432
        %v434 = vpop.xlane.xlu0 %433
        %v435 = vrcp.pop %v434
        %v436 = vmul.f32 %v431, %v435
        %v437 = vpack.c.bf16 %v436, %v436
        %v438 = vpack.c.bf16 %v332, %v332
        %440 = vrot.lane.b32.xlu0 %v438, 64
        %v441 = vpop.permute.xlu0 %440
        %v443 = vsel %vm351, %v437, 0
        %vm445 = vcmask 1043456
        %v447 = vsel %vm445, %v441, 0
        %449 = vmatprep.subr.bf16.mxu0 0
        %450 = vmatpush1.bf16.msra.mxu0 %v447
        %451 = vmatprep.subr.bf16.mxu0 0
        %452 = vmatpush1.bf16.msra.mxu0 0
        %453 = vmatprep.subr.bf16.mxu0 0
        %454 = vmatpush1.bf16.msra.mxu0 0
        %455 = vmatprep.subr.bf16.mxu0 0
        %456 = vmatpush1.bf16.msra.mxu0 0
        %457 = vmatprep.subr.bf16.mxu0 0
        %458 = vmatpush1.bf16.msra.mxu0 0
        %459 = vmatprep.subr.bf16.mxu0 0
        %460 = vmatpush1.bf16.msra.mxu0 0
        %461 = vmatprep.subr.bf16.mxu0 0
        %462 = vmatpush1.bf16.msra.mxu0 0
        %463 = vmatprep.subr.bf16.mxu0 0
        %464 = vmatpush1.bf16.msra.mxu0 0
        %465 = vmatprep.subr.bf16.mxu0 0
        %466 = vmatpush1.bf16.msra.mxu0 0
        %467 = vmatprep.subr.bf16.mxu0 0
        %468 = vmatpush1.bf16.msra.mxu0 0
        %469 = vmatprep.subr.bf16.mxu0 0
        %470 = vmatpush1.bf16.msra.mxu0 0
        %471 = vmatprep.subr.bf16.mxu0 0
        %472 = vmatpush1.bf16.msra.mxu0 0
        %473 = vmatprep.subr.bf16.mxu0 0
        %474 = vmatpush1.bf16.msra.mxu0 0
        %475 = vmatprep.subr.bf16.mxu0 0
        %476 = vmatpush1.bf16.msra.mxu0 0
        %477 = vmatprep.subr.bf16.mxu0 0
        %478 = vmatpush1.bf16.msra.mxu0 0
        %479 = vmatprep.subr.bf16.mxu0 0
        %480 = vmatpush1.bf16.msra.mxu0 0
        %481 = vmatprep.mubr.bf16.mxu0 0
        %482 = vmatmul.mubr.bf16.gmra.mrb[0].mxu0 %v443
        %v483 = vpop.f32.mrb[0].mxu0
        %v484 = vadd.f32 0.0, %v483
        %v485 = vpop.f32.mrb[0].mxu0
        %v486 = vpop.f32.mrb[0].mxu0
        %v487 = vpop.f32.mrb[0].mxu0
        %488 = vdwg.mxu0
        %v489 = vsel %vm351, %v360, %v346
        %491 = vrot.lane.b32.xlu0 %v337, 16
        %v492 = vpop.permute.xlu0 %491
        %v494 = vmul.f32 %v332, %v492
        %v495 = vmul.f32 %v489, %v339
        %497 = vrot.lane.b32.xlu0 %v495, 16
        %v498 = vpop.permute.xlu0 %497
        %v500 = vadd.f32 %v494, %v498
        %501 = vrot.lane.b32.xlu0 %v332, 72
        %v502 = vpop.permute.xlu0 %501
        %v504 = vsel %vm351, %v502, %v357
        %505 = vrot.lane.b32.xlu0 %v341, 48
        %v506 = vpop.permute.xlu0 %505
        %v508 = vmul.f32 %v332, %v506
        %v509 = vmul.f32 %v504, %v343
        %511 = vrot.lane.b32.xlu0 %v509, 48
        %v512 = vpop.permute.xlu0 %511
        %v514 = vadd.f32 %v508, %v512
        %v515 = vpack.c.bf16 %v500, %v500
        %v516 = vpack.c.bf16 %v514, %v514
        %518 = vrot.lane.b32.xlu0 %v515, 112
        %v519 = vpop.permute.xlu0 %518
        %521 = vrot.lane.b32.xlu0 %v516, 80
        %v522 = vpop.permute.xlu0 %521
        %v524 = vsel %vm379, %v519, 0
        %v527 = vsel %vm379, %v522, 0
        %529 = vmatprep.subr.bf16.mxu0 0
        %530 = vmatpush1.bf16.xpose.msra.mxu0 %v527
        %531 = vmatprep.subr.bf16.mxu0 0
        %532 = vmatpush1.bf16.xpose.msra.mxu0 0
        %533 = vmatprep.subr.bf16.mxu0 0
        %534 = vmatpush1.bf16.xpose.msra.mxu0 0
        %535 = vmatprep.subr.bf16.mxu0 0
        %536 = vmatpush1.bf16.xpose.msra.mxu0 0
        %537 = vmatprep.subr.bf16.mxu0 0
        %538 = vmatpush1.bf16.xpose.msra.mxu0 0
        %539 = vmatprep.subr.bf16.mxu0 0
        %540 = vmatpush1.bf16.xpose.msra.mxu0 0
        %541 = vmatprep.subr.bf16.mxu0 0
        %542 = vmatpush1.bf16.xpose.msra.mxu0 0
        %543 = vmatprep.subr.bf16.mxu0 0
        %544 = vmatpush1.bf16.xpose.msra.mxu0 0
        %545 = vmatprep.subr.bf16.mxu0 0
        %546 = vmatpush1.bf16.xpose.msra.mxu0 0
        %547 = vmatprep.subr.bf16.mxu0 0
        %548 = vmatpush1.bf16.xpose.msra.mxu0 0
        %549 = vmatprep.subr.bf16.mxu0 0
        %550 = vmatpush1.bf16.xpose.msra.mxu0 0
        %551 = vmatprep.subr.bf16.mxu0 0
        %552 = vmatpush1.bf16.xpose.msra.mxu0 0
        %553 = vmatprep.subr.bf16.mxu0 0
        %554 = vmatpush1.bf16.xpose.msra.mxu0 0
        %555 = vmatprep.subr.bf16.mxu0 0
        %556 = vmatpush1.bf16.xpose.msra.mxu0 0
        %557 = vmatprep.subr.bf16.mxu0 0
        %558 = vmatpush1.bf16.xpose.msra.mxu0 0
        %559 = vmatprep.subr.bf16.mxu0 0
        %560 = vmatpush1.bf16.xpose.msra.mxu0 0
        %561 = vmatprep.mubr.bf16.mxu0 0
        %562 = vmatmul.mubr.bf16.gmra.mrb[0].mxu0 %v524
        %v563 = vpop.f32.mrb[0].mxu0
        %v564 = vadd.f32 0.0, %v563
        %v565 = vpop.f32.mrb[0].mxu0
        %v566 = vpop.f32.mrb[0].mxu0
        %v567 = vpop.f32.mrb[0].mxu0
        %568 = vdwg.mxu0
        %v569 = vsel %vm351, %v564, -inf
        %570 = vmax.xlane.f32.xlu0 %v569
        %v571 = vpop.xlane.xlu0 %570
        %v572 = vsub.f32 %v564, %v571
        %v573 = vmul.f32 %v572, 1.442695
        %v574 = vpow.pop %v573
        %v575 = vsel %vm351, %v574, 0.0
        %576 = vadd.xlane.f32.xlu0 %v575
        %v577 = vpop.xlane.xlu0 %576
        %v578 = vrcp.pop %v577
        %v579 = vmul.f32 %v574, %v578
        %v580 = vpack.c.bf16 %v579, %v579
        %581 = vrot.lane.b32.xlu0 %v438, 48
        %v582 = vpop.permute.xlu0 %581
        %v584 = vsel %vm351, %v580, 0
        %v587 = vsel %vm445, %v582, 0
        %589 = vmatprep.subr.bf16.mxu0 0
        %590 = vmatpush1.bf16.msra.mxu0 %v587
        %591 = vmatprep.subr.bf16.mxu0 0
        %592 = vmatpush1.bf16.msra.mxu0 0
        %593 = vmatprep.subr.bf16.mxu0 0
        %594 = vmatpush1.bf16.msra.mxu0 0
        %595 = vmatprep.subr.bf16.mxu0 0
        %596 = vmatpush1.bf16.msra.mxu0 0
        %597 = vmatprep.subr.bf16.mxu0 0
        %598 = vmatpush1.bf16.msra.mxu0 0
        %599 = vmatprep.subr.bf16.mxu0 0
        %600 = vmatpush1.bf16.msra.mxu0 0
        %601 = vmatprep.subr.bf16.mxu0 0
        %602 = vmatpush1.bf16.msra.mxu0 0
        %603 = vmatprep.subr.bf16.mxu0 0
        %604 = vmatpush1.bf16.msra.mxu0 0
        %605 = vmatprep.subr.bf16.mxu0 0
        %606 = vmatpush1.bf16.msra.mxu0 0
        %607 = vmatprep.subr.bf16.mxu0 0
        %608 = vmatpush1.bf16.msra.mxu0 0
        %609 = vmatprep.subr.bf16.mxu0 0
        %610 = vmatpush1.bf16.msra.mxu0 0
        %611 = vmatprep.subr.bf16.mxu0 0
        %612 = vmatpush1.bf16.msra.mxu0 0
        %613 = vmatprep.subr.bf16.mxu0 0
        %614 = vmatpush1.bf16.msra.mxu0 0
        %615 = vmatprep.subr.bf16.mxu0 0
        %616 = vmatpush1.bf16.msra.mxu0 0
        %617 = vmatprep.subr.bf16.mxu0 0
        %618 = vmatpush1.bf16.msra.mxu0 0
        %619 = vmatprep.subr.bf16.mxu0 0
        %620 = vmatpush1.bf16.msra.mxu0 0
        %621 = vmatprep.mubr.bf16.mxu0 0
        %622 = vmatmul.mubr.bf16.gmra.mrb[0].mxu0 %v584
        %v623 = vpop.f32.mrb[0].mxu0
        %v624 = vadd.f32 0.0, %v623
        %v625 = vpop.f32.mrb[0].mxu0
        %v626 = vpop.f32.mrb[0].mxu0
        %v627 = vpop.f32.mrb[0].mxu0
        %628 = vdwg.mxu0
        %630 = vrot.lane.b32.xlu0 %v624, 16
        %v631 = vpop.permute.xlu0 %630
        %v633 = vsel %vm379, %v484, %v631
        %v634 = vpack.c.bf16 %v633, %v633
        %v635 = vld [vmem:[#allocation7] sm:$0xff]
        %v636 = vld [vmem:[#allocation7 + $0x8] sm:$0xff]
        %v637 = vld [vmem:[#allocation7 + $0x10] sm:$0xff]
        %v638 = vld [vmem:[#allocation7 + $0x18] sm:$0xff]
        %v639 = vpack.c.bf16 %v636, %v635
        %v640 = vpack.c.bf16 %v638, %v637
        %v641 = vld [vmem:[%s3] sm:$0x1]
        %v643 = vlaneseq
        %v644 = vshrl.u32 %v643, 7
        %v645 = vsub.s32 0, %v644
        %v646 = vrot.slane %v641, %v645
        %v649 = vsel %vm293, %v634, 0
        %651 = vmatprep.subr.bf16.mxu0 0
        %652 = vmatpush1.bf16.msra.mxu0 %v639
        %653 = vmatprep.subr.bf16.mxu0 0
        %654 = vmatpush1.bf16.msra.mxu0 %v640
        %655 = vmatprep.subr.bf16.mxu0 0
        %656 = vmatpush1.bf16.msra.mxu0 0
        %657 = vmatprep.subr.bf16.mxu0 0
        %658 = vmatpush1.bf16.msra.mxu0 0
        %659 = vmatprep.subr.bf16.mxu0 0
        %660 = vmatpush1.bf16.msra.mxu0 0
        %661 = vmatprep.subr.bf16.mxu0 0
        %662 = vmatpush1.bf16.msra.mxu0 0
        %663 = vmatprep.subr.bf16.mxu0 0
        %664 = vmatpush1.bf16.msra.mxu0 0
        %665 = vmatprep.subr.bf16.mxu0 0
        %666 = vmatpush1.bf16.msra.mxu0 0
        %667 = vmatprep.subr.bf16.mxu0 0
        %668 = vmatpush1.bf16.msra.mxu0 0
        %669 = vmatprep.subr.bf16.mxu0 0
        %670 = vmatpush1.bf16.msra.mxu0 0
        %671 = vmatprep.subr.bf16.mxu0 0
        %672 = vmatpush1.bf16.msra.mxu0 0
        %673 = vmatprep.subr.bf16.mxu0 0
        %674 = vmatpush1.bf16.msra.mxu0 0
        %675 = vmatprep.subr.bf16.mxu0 0
        %676 = vmatpush1.bf16.msra.mxu0 0
        %677 = vmatprep.subr.bf16.mxu0 0
        %678 = vmatpush1.bf16.msra.mxu0 0
        %679 = vmatprep.subr.bf16.mxu0 0
        %680 = vmatpush1.bf16.msra.mxu0 0
        %681 = vmatprep.subr.bf16.mxu0 0
        %682 = vmatpush1.bf16.msra.mxu0 0
        %683 = vmatprep.mubr.bf16.mxu0 0
        %684 = vmatmul.mubr.bf16.gmra.mrb[0].mxu0 %v649
        %v685 = vpop.f32.mrb[0].mxu0
        %v686 = vadd.f32 %v646, %v685
        %v687 = vpop.f32.mrb[0].mxu0
        %v688 = vpop.f32.mrb[0].mxu0
        %v689 = vpop.f32.mrb[0].mxu0
        %690 = vdwg.mxu0
        %691 = vst.msk [vmem:[%s283] sm:$0xff] %vm293, %v686
        %s692 = sand.u32 %s142, 1
        %s693 = scalar_lea.sflag [#allocation4], %s692
        %s694 = sand.u32 %s142, 1
        %s695 = smul.addr %s694, 8
        %s696 = scalar_lea.vmem [#allocation10], %s695
        // Predicated region
        $region57: #{tpu_custom_call.1} parent=39 // pred_check
          %p697 = pneg %p152
        $region58: #{tpu_custom_call.1} parent=39 // pred_check_branch
          %699 = sbr.rel (%p697) target = $region60
        $region59: #{tpu_custom_call.1} parent=39 // pred_region
          %s701 = ssub.s32 128, 128
          %702 = vsyncadd %s693, %s701
          %s703 = smul.addr %s24, 128
          %s704 = scalar_lea.hbm %s5, %s703
          %s706 = sshll.u32 %s696, 4
          %s707 = int_to_ptr.vmem [resolvable:$true] %s706
          %709 = dma.vmem_to_hbm [thread:$0]  %s707, 128, %s704, %s693
        $region60: #{tpu_custom_call.1} parent=39 // pred_fallthru
          _
      $region40: #{tpu_custom_call.1} parent=5 // pred_fallthru
        _
      %p710 = scmp.le.s32.totalorder 2, %s19
      // Predicated region
      $region61: #{tpu_custom_call.1} parent=5 // pred_check
        %p711 = pneg %p710
      $region62: #{tpu_custom_call.1} parent=5 // pred_check_branch
        %713 = sbr.rel (%p711) target = $region64
      $region63: #{tpu_custom_call.1} parent=5 // pred_region
        %s714 = ssub.s32 %s19, 2
        // Predicated region
        $region65: #{tpu_custom_call.1} parent=63 // pred_check
          %p715 = pneg %p158
        $region66: #{tpu_custom_call.1} parent=63 // pred_check_branch
          %717 = sbr.rel (%p715) target = $region68
        $region67: #{tpu_custom_call.1} parent=63 // pred_region
          %s718 = sand.u32 %s143, 1
          %s719 = scalar_lea.sflag [#allocation4], %s718
          %s720 = sand.u32 %s143, 1
          %s721 = smul.addr %s720, 8
          %s722 = scalar_lea.vmem [#allocation10], %s721
          %723 = dma.done %s719, 128
        $region68: #{tpu_custom_call.1} parent=63 // pred_fallthru
          _
      $region64: #{tpu_custom_call.1} parent=5 // pred_fallthru
        _
    $region6: #{tpu_custom_call.1} parent=1 // loop_footer
      %s23 = sadd.s32 1, %s19
    $region7: #{tpu_custom_call.1} parent=1 // loop_footer_branch
      %18 = sbr.rel target = $region3
    $region8: #{tpu_custom_call.1} parent=1 // loop_exit
      _
    %724 = vsyncpa [#allocation3], 1
    %s725 = scalar_lea.sflag [#allocation3], 1
    %726 = vsyncpa %s725, 1
    %727 = vsyncpa [#allocation6], 1
    %728 = vsyncpa [#allocation9], 1
    %729 = vsyncpa [#allocation4], 1
    %s730 = scalar_lea.sflag [#allocation4], 1
    %731 = vsyncpa %s730, 1

</llo_original>
